<compile_context>
chip_gen: v7x
topology: tpu7x:2x2x1
jax: 0.10.0
libtpu: 0.0.40
codegen_flags: <defaults>
</compile_context>

<pallas_src>
import functools

import jax
import jax.numpy as jnp
from jax import lax
from jax.experimental import pallas as pl
from jax.experimental.pallas import tpu as pltpu


def _stats_kernel(x_ref, stats_ref, *, L2, TL):
    # x_ref     : (1, C, TL)  one batch element, all channels, one lane tile of
    #             the flattened H*W*2 axis (even lane = real, odd lane = imag).
    # stats_ref : (1, C, 4)   [sum_re, sum_im, sumsq_re, sumsq_im] accumulated
    #             across the lane-tile grid axis (last, "arbitrary").
    j = pl.program_id(1)

    @pl.when(j == 0)
    def _():
        stats_ref[...] = jnp.zeros_like(stats_ref)

    x = x_ref[0].astype(jnp.float32)                      # (C, TL)
    C = x.shape[0]
    lane = lax.broadcasted_iota(jnp.int32, (C, TL), 1)
    is_real = (lane & 1) == 0
    if L2 % TL != 0:
        # Mask out-of-bounds lanes of the final partial tile.
        valid = (j * TL + lane) < L2
        real_m = is_real & valid
        imag_m = jnp.logical_not(is_real) & valid
    else:
        real_m = is_real
        imag_m = jnp.logical_not(is_real)

    xr = jnp.where(real_m, x, 0.0)
    xi = jnp.where(imag_m, x, 0.0)
    upd = jnp.concatenate(
        [jnp.sum(xr, axis=-1, keepdims=True),
         jnp.sum(xi, axis=-1, keepdims=True),
         jnp.sum(xr * xr, axis=-1, keepdims=True),
         jnp.sum(xi * xi, axis=-1, keepdims=True)],
        axis=-1)                                          # (C, 4)
    stats_ref[0] = stats_ref[0] + upd


def _norm_kernel(x_ref, scale_ref, shift_ref, o_ref):
    # y = x * scale[c, parity] + shift[c, parity],   parity = lane & 1.
    # OOB lanes of a partial final tile are computed on garbage but their
    # stores are discarded by Pallas, so no mask is needed here.
    x = x_ref[0].astype(jnp.float32)                      # (C, TL)
    C, TL = x.shape
    lane = lax.broadcasted_iota(jnp.int32, (C, TL), 1)
    is_real = (lane & 1) == 0
    scale = jnp.where(is_real, scale_ref[:, 0:1], scale_ref[:, 1:2])
    shift = jnp.where(is_real, shift_ref[:, 0:1], shift_ref[:, 1:2])
    o_ref[0] = (x * scale + shift).astype(o_ref.dtype)


def _choose_tl(C, L2, itemsize):
    """Lane-tile size: multiple of 512 lanes, ~2 MiB per block, VMEM-safe."""
    target = 2 * 1024 * 1024
    if L2 <= 512 or C * L2 * itemsize <= target:
        return L2                      # whole row fits; full-dim block is legal
    tl = max(512, ((target // (C * itemsize)) // 512) * 512)
    return min(tl, L2)


def cbatchnorm2d(x, gamma, beta, eps=1e-5):
    """Complex BatchNorm2d forward (training-mode batch statistics).

    x     : (N, C, H, W, 2)
    gamma : (2, C)   affine scale  (row 0 = real BN, row 1 = imag BN)
    beta  : (2, C)   affine shift
    returns (N, C, H, W, 2)
    """
    N, C, H, W, two = x.shape
    assert two == 2
    L2 = H * W * 2
    cnt = N * H * W                    # samples per channel per component

    x3 = x.reshape(N, C, L2)           # contiguous view: no transpose / copy
    TL = _choose_tl(C, L2, x.dtype.itemsize)
    n_lt = pl.cdiv(L2, TL)

    # ---------------- pass 1: per-(n, c) moments ----------------
    stats = pl.pallas_call(
        functools.partial(_stats_kernel, L2=L2, TL=TL),
        out_shape=jax.ShapeDtypeStruct((N, C, 4), jnp.float32),
        grid_spec=pltpu.PrefetchScalarGridSpec(
            num_scalar_prefetch=0,
            grid=(N, n_lt),
            in_specs=[pl.BlockSpec((1, C, TL), lambda n, j: (n, 0, j))],
            out_specs=pl.BlockSpec((1, C, 4), lambda n, j: (n, 0, 0)),
        ),
        compiler_params=pltpu.CompilerParams(
            dimension_semantics=("parallel", "arbitrary"),
            vmem_limit_bytes=32 * 1024 * 1024),
    )(x3)

    # Tiny (C, 2)-sized moment math stays in plain XLA (fused under jit).
    s = jnp.sum(stats, axis=0)                       # (C, 4)
    mean = s[:, 0:2] / cnt                           # (C, 2) [real, imag]
    var = jnp.maximum(s[:, 2:4] / cnt - mean * mean, 0.0)   # biased variance
    inv = lax.rsqrt(var + eps)
    g = gamma.astype(jnp.float32).T                  # (C, 2)
    b = beta.astype(jnp.float32).T                   # (C, 2)
    scale = g * inv                                  # (C, 2)
    shift = b - mean * scale                         # (C, 2)

    # ---------------- pass 2: normalize + affine ----------------
    out3 = pl.pallas_call(
        _norm_kernel,
        out_shape=jax.ShapeDtypeStruct((N, C, L2), x.dtype),
        grid_spec=pltpu.PrefetchScalarGridSpec(
            num_scalar_prefetch=0,
            grid=(N, n_lt),
            in_specs=[
                pl.BlockSpec((1, C, TL), lambda n, j: (n, 0, j)),
                pl.BlockSpec((C, 2), lambda n, j: (0, 0)),
                pl.BlockSpec((C, 2), lambda n, j: (0, 0)),
            ],
            out_specs=pl.BlockSpec((1, C, TL), lambda n, j: (n, 0, j)),
        ),
        compiler_params=pltpu.CompilerParams(
            dimension_semantics=("parallel", "parallel"),
            vmem_limit_bytes=32 * 1024 * 1024),
    )(x3, scale, shift)

    return out3.reshape(N, C, H, W, 2)


def _reference(x, gamma, beta, eps=1e-5):
    # Pure-JAX reference replicating torch.nn.BatchNorm2d training forward.
    xr = x[..., 0]
    xi = x[..., 1]

    def bn(v, g, b):
        mean = jnp.mean(v, axis=(0, 2, 3), keepdims=True)
        var = jnp.mean((v - mean) ** 2, axis=(0, 2, 3), keepdims=True)
        vhat = (v - mean) / jnp.sqrt(var + eps)
        return vhat * g[None, :, None, None] + b[None, :, None, None]

    nr = bn(xr, gamma[0], beta[0])
    ni = bn(xi, gamma[1], beta[1])
    return jnp.stack([nr, ni], axis=-1)


if __name__ == "__main__":
    key = jax.random.PRNGKey(0)
    N, C, H, W = 2, 4, 16, 16
    x = jax.random.normal(key, (N, C, H, W, 2), dtype=jnp.float32)

    # Deterministic BatchNorm2d default init: gamma=1, beta=0 (per component).
    gamma = jnp.ones((2, C), dtype=jnp.float32)
    beta = jnp.zeros((2, C), dtype=jnp.float32)

    fn = jax.jit(cbatchnorm2d)
    out = jax.block_until_ready(fn(x, gamma, beta))

    ref = _reference(x, gamma, beta)
    assert out.shape == (N, C, H, W, 2)
    assert jnp.allclose(out, ref, atol=1e-4, rtol=1e-4), "mismatch vs reference"

    print("KERNEL_OK")
</pallas_src>

<mosaic_0001>
module attributes {stable_mosaic.version = 11 : i64} {
  func.func @_stats_kernel(%arg0: i32, %arg1: i32, %arg2: memref<1x4x512xf32, #tpu.memory_space<vmem>>, %arg3: memref<1x4x4xf32, #tpu.memory_space<vmem>>) attributes {dimension_semantics = [#tpu.dimension_semantics<parallel>, #tpu.dimension_semantics<arbitrary>], iteration_bounds = array<i64: 2, 1>, scalar_prefetch = 0 : i64, scratch_operands = 0 : i64, tpu.core_type = #tpu.core_type<tc>, window_params = [{transform_indices = @transform_0, window_bounds = array<i64: 1, 4, 512>}, {transform_indices = @transform_1, window_bounds = array<i64: 1, 4, 4>}]} {
    %c0_i32 = arith.constant 0 : i32
    %0 = arith.cmpi eq, %arg1, %c0_i32 : i32
    %1 = arith.extui %0 : i1 to i32
    %c0_i32_0 = arith.constant 0 : i32
    %2 = arith.cmpi ne, %1, %c0_i32_0 : i32
    scf.if %2 {
      %cst_16 = arith.constant 0.000000e+00 : f32
      %32 = vector.broadcast %cst_16 : f32 to vector<1x4x4xf32>
      %c0_17 = arith.constant 0 : index
      %c0_18 = arith.constant 0 : index
      %c0_19 = arith.constant 0 : index
      %33 = vector.load %arg3[%c0_17, %c0_18, %c0_19] : memref<1x4x4xf32, #tpu.memory_space<vmem>>, vector<1x4x4xf32>
      tpu.vector_store %arg3[%c0_17, %c0_18, %c0_19], %32 {strides = array<i32>} : memref<1x4x4xf32, #tpu.memory_space<vmem>>, vector<1x4x4xf32>,
    } else {
    }
    %c0 = arith.constant 0 : index
    %c0_1 = arith.constant 0 : index
    %c0_2 = arith.constant 0 : index
    %3 = vector.load %arg2[%c0, %c0_1, %c0_2] : memref<1x4x512xf32, #tpu.memory_space<vmem>>, vector<1x4x512xf32>
    %4 = vector.shape_cast %3 : vector<1x4x512xf32> to vector<4x512xf32>
    %5 = tpu.iota {dimensions = array<i32: 1>} : vector<4x512xi32>
    %c1_i32 = arith.constant 1 : i32
    %6 = vector.broadcast %c1_i32 : i32 to vector<4x512xi32>
    %7 = arith.andi %5, %6 : vector<4x512xi32>
    %c0_i32_3 = arith.constant 0 : i32
    %8 = vector.broadcast %c0_i32_3 : i32 to vector<4x512xi32>
    %9 = arith.cmpi eq, %7, %8 : vector<4x512xi32>
    %cst = arith.constant dense<true> : vector<4x512xi1>
    %10 = arith.xori %9, %cst : vector<4x512xi1>
    %cst_4 = arith.constant 0.000000e+00 : f32
    %11 = vector.broadcast %cst_4 : f32 to vector<4x512xf32>
    %12 = arith.select %9, %4, %11 : vector<4x512xi1>, vector<4x512xf32>
    %cst_5 = arith.constant 0.000000e+00 : f32
    %13 = vector.broadcast %cst_5 : f32 to vector<4x512xf32>
    %14 = arith.select %10, %4, %13 : vector<4x512xi1>, vector<4x512xf32>
    %cst_6 = arith.constant dense<0.000000e+00> : vector<4xf32>
    %15 = vector.multi_reduction <add>, %12, %cst_6 [1] : vector<4x512xf32> to vector<4xf32>
    %16 = vector.shape_cast %15 : vector<4xf32> to vector<4x1xf32>
    %cst_7 = arith.constant dense<0.000000e+00> : vector<4xf32>
    %17 = vector.multi_reduction <add>, %14, %cst_7 [1] : vector<4x512xf32> to vector<4xf32>
    %18 = vector.shape_cast %17 : vector<4xf32> to vector<4x1xf32>
    %19 = arith.mulf %12, %12 : vector<4x512xf32>
    %cst_8 = arith.constant dense<0.000000e+00> : vector<4xf32>
    %20 = vector.multi_reduction <add>, %19, %cst_8 [1] : vector<4x512xf32> to vector<4xf32>
    %21 = vector.shape_cast %20 : vector<4xf32> to vector<4x1xf32>
    %22 = arith.mulf %14, %14 : vector<4x512xf32>
    %cst_9 = arith.constant dense<0.000000e+00> : vector<4xf32>
    %23 = vector.multi_reduction <add>, %22, %cst_9 [1] : vector<4x512xf32> to vector<4xf32>
    %24 = vector.shape_cast %23 : vector<4xf32> to vector<4x1xf32>
    %25 = tpu.concatenate %16, %18, %21, %24 in 1 : vector<4x1xf32>, vector<4x1xf32>, vector<4x1xf32>, vector<4x1xf32> -> vector<4x4xf32>
    %c0_10 = arith.constant 0 : index
    %c0_11 = arith.constant 0 : index
    %c0_12 = arith.constant 0 : index
    %26 = vector.load %arg3[%c0_10, %c0_11, %c0_12] : memref<1x4x4xf32, #tpu.memory_space<vmem>>, vector<1x4x4xf32>
    %27 = vector.shape_cast %26 : vector<1x4x4xf32> to vector<4x4xf32>
    %28 = arith.addf %27, %25 : vector<4x4xf32>
    %c0_13 = arith.constant 0 : index
    %c0_14 = arith.constant 0 : index
    %c0_15 = arith.constant 0 : index
    %29 = vector.load %arg3[%c0_13, %c0_14, %c0_15] : memref<1x4x4xf32, #tpu.memory_space<vmem>>, vector<1x4x4xf32>
    %30 = vector.shape_cast %29 : vector<1x4x4xf32> to vector<4x4xf32>
    %31 = vector.shape_cast %28 : vector<4x4xf32> to vector<1x4x4xf32>
    tpu.vector_store %arg3[%c0_13, %c0_14, %c0_15], %31 {strides = array<i32>} : memref<1x4x4xf32, #tpu.memory_space<vmem>>, vector<1x4x4xf32>,
    return
  }
  func.func @transform_0(%arg0: i32, %arg1: i32) -> (i32, i32, i32) {
    %c0_i32 = arith.constant 0 : i32
    %c0_i32_0 = arith.constant 0 : i32
    return %arg0, %c0_i32, %arg1 : i32, i32, i32
  }
  func.func @transform_1(%arg0: i32, %arg1: i32) -> (i32, i32, i32) {
    %c0_i32 = arith.constant 0 : i32
    %c0_i32_0 = arith.constant 0 : i32
    %c0_i32_1 = arith.constant 0 : i32
    return %arg0, %c0_i32, %c0_i32_0 : i32, i32, i32
  }
}

module attributes {stable_mosaic.version = 11 : i64} {
  func.func @_norm_kernel(%arg0: i32, %arg1: i32, %arg2: memref<1x4x512xf32, #tpu.memory_space<vmem>>, %arg3: memref<4x2xf32, #tpu.memory_space<vmem>>, %arg4: memref<4x2xf32, #tpu.memory_space<vmem>>, %arg5: memref<1x4x512xf32, #tpu.memory_space<vmem>>) attributes {dimension_semantics = [#tpu.dimension_semantics<parallel>, #tpu.dimension_semantics<parallel>], iteration_bounds = array<i64: 2, 1>, scalar_prefetch = 0 : i64, scratch_operands = 0 : i64, tpu.core_type = #tpu.core_type<tc>, window_params = [{transform_indices = @transform_0, window_bounds = array<i64: 1, 4, 512>}, {pipeline_mode = #tpu.pipeline_mode<synchronous>, transform_indices = @transform_1, window_bounds = array<i64: 4, 2>}, {pipeline_mode = #tpu.pipeline_mode<synchronous>, transform_indices = @transform_2, window_bounds = array<i64: 4, 2>}, {transform_indices = @transform_3, window_bounds = array<i64: 1, 4, 512>}]} {
    %c0 = arith.constant 0 : index
    %c0_0 = arith.constant 0 : index
    %c0_1 = arith.constant 0 : index
    %0 = vector.load %arg2[%c0, %c0_0, %c0_1] : memref<1x4x512xf32, #tpu.memory_space<vmem>>, vector<1x4x512xf32>
    %1 = vector.shape_cast %0 : vector<1x4x512xf32> to vector<4x512xf32>
    %2 = tpu.iota {dimensions = array<i32: 1>} : vector<4x512xi32>
    %c1_i32 = arith.constant 1 : i32
    %3 = vector.broadcast %c1_i32 : i32 to vector<4x512xi32>
    %4 = arith.andi %2, %3 : vector<4x512xi32>
    %c0_i32 = arith.constant 0 : i32
    %5 = vector.broadcast %c0_i32 : i32 to vector<4x512xi32>
    %6 = arith.cmpi eq, %4, %5 : vector<4x512xi32>
    %c0_2 = arith.constant 0 : index
    %c0_3 = arith.constant 0 : index
    %7 = vector.load %arg3[%c0_2, %c0_3] : memref<4x2xf32, #tpu.memory_space<vmem>>, vector<4x1xf32>
    %c0_4 = arith.constant 0 : index
    %c1 = arith.constant 1 : index
    %8 = vector.load %arg3[%c0_4, %c1] : memref<4x2xf32, #tpu.memory_space<vmem>>, vector<4x1xf32>
    %9 = vector.shape_cast %7 : vector<4x1xf32> to vector<4x1xf32>
    %10 = vector.broadcast %9 : vector<4x1xf32> to vector<4x512xf32>
    %11 = vector.shape_cast %8 : vector<4x1xf32> to vector<4x1xf32>
    %12 = vector.broadcast %11 : vector<4x1xf32> to vector<4x512xf32>
    %13 = arith.select %6, %10, %12 : vector<4x512xi1>, vector<4x512xf32>
    %c0_5 = arith.constant 0 : index
    %c0_6 = arith.constant 0 : index
    %14 = vector.load %arg4[%c0_5, %c0_6] : memref<4x2xf32, #tpu.memory_space<vmem>>, vector<4x1xf32>
    %c0_7 = arith.constant 0 : index
    %c1_8 = arith.constant 1 : index
    %15 = vector.load %arg4[%c0_7, %c1_8] : memref<4x2xf32, #tpu.memory_space<vmem>>, vector<4x1xf32>
    %16 = vector.shape_cast %14 : vector<4x1xf32> to vector<4x1xf32>
    %17 = vector.broadcast %16 : vector<4x1xf32> to vector<4x512xf32>
    %18 = vector.shape_cast %15 : vector<4x1xf32> to vector<4x1xf32>
    %19 = vector.broadcast %18 : vector<4x1xf32> to vector<4x512xf32>
    %20 = arith.select %6, %17, %19 : vector<4x512xi1>, vector<4x512xf32>
    %21 = arith.mulf %1, %13 : vector<4x512xf32>
    %22 = arith.addf %21, %20 : vector<4x512xf32>
    %c0_9 = arith.constant 0 : index
    %c0_10 = arith.constant 0 : index
    %c0_11 = arith.constant 0 : index
    %23 = vector.load %arg5[%c0_9, %c0_10, %c0_11] : memref<1x4x512xf32, #tpu.memory_space<vmem>>, vector<1x4x512xf32>
    %24 = vector.shape_cast %23 : vector<1x4x512xf32> to vector<4x512xf32>
    %25 = vector.shape_cast %22 : vector<4x512xf32> to vector<1x4x512xf32>
    tpu.vector_store %arg5[%c0_9, %c0_10, %c0_11], %25 {strides = array<i32>} : memref<1x4x512xf32, #tpu.memory_space<vmem>>, vector<1x4x512xf32>,
    return
  }
  func.func @transform_0(%arg0: i32, %arg1: i32) -> (i32, i32, i32) {
    %c0_i32 = arith.constant 0 : i32
    %c0_i32_0 = arith.constant 0 : i32
    return %arg0, %c0_i32, %arg1 : i32, i32, i32
  }
  func.func @transform_1(%arg0: i32, %arg1: i32) -> (i32, i32) {
    %c0_i32 = arith.constant 0 : i32
    %c0_i32_0 = arith.constant 0 : i32
    %c0_i32_1 = arith.constant 0 : i32
    return %c0_i32, %c0_i32_0 : i32, i32
  }
  func.func @transform_2(%arg0: i32, %arg1: i32) -> (i32, i32) {
    %c0_i32 = arith.constant 0 : i32
    %c0_i32_0 = arith.constant 0 : i32
    %c0_i32_1 = arith.constant 0 : i32
    return %c0_i32, %c0_i32_0 : i32, i32
  }
  func.func @transform_3(%arg0: i32, %arg1: i32) -> (i32, i32, i32) {
    %c0_i32 = arith.constant 0 : i32
    %c0_i32_0 = arith.constant 0 : i32
    return %arg0, %c0_i32, %arg1 : i32, i32, i32
  }
}

</mosaic_0001>

<llo_original>
// kernel: cbatchnorm2d.2
$region0: #{cbatchnorm2d.2}
  #allocation0 [shape = 'u32[]', space=smem, size = 0x4, offset = 0x4, fixed_abs, tag = 'smem constant byte address 0x4 - core index']
  #allocation1 [shape = 'u32[144,128]{1,0:T(1,128)}', space=vmem, size = 0x12000, scoped, tag = 'internal scratch']
  %s0 = inlined_call_operand.vmem [shape: f32[2,4,512], index: 0, kind: input, shape index: {}]
  %s1 = inlined_call_operand.vmem [shape: f32[2,4,4], index: 1, kind: output, shape index: {}]
  %s2 = sld [smem:[#allocation0]]
  $region41: #{cbatchnorm2d.2} parent=0
    _
  %s4 = ssub.s32 1, %s2
  %s5 = scalar_select 0, %s4, %s2
  loop: start=0, step=1, limit=4
  $region2: #{cbatchnorm2d.2} parent=0 // loop_pre_header
    _
  $region3: #{cbatchnorm2d.2} parent=0 // loop_header
    %s7 = sphi 0, %s11
    %p8 = scmp.ge.s32.totalorder %s7, 4
    %s14 = sphi 0, %s26
    %s15 = sphi 0, %s22
    %s16 = sphi 0, %s14
    %s17 = sphi 0, %s15
    %s18 = sphi 0, %s16
    %s19 = sphi 0, %s17
    %s31 = sphi 0, %s33
    %s34 = sphi 0, %s31
    %s35 = sphi 0, %s34
    %s51 = sphi 0, %s35
    %s57 = sphi 0, %s59
    %s60 = sphi 0, %s57
    %s61 = sphi 0, %s60
    %s77 = sphi 0, %s61
  $region4: #{cbatchnorm2d.2} parent=0 // loop_header_branch
    %10 = sbr.rel (%p8) target = $region8
  $region5: #{cbatchnorm2d.2} parent=0 // loop_body
    %s12 = ssub.s32 %s7, 1
    %s13 = ssub.s32 %s7, 2
    %s20 = sadd.s32 1, %s15
    %p21 = scmp.ge.s32.totalorder %s20, 1
    %s22 = scalar_select %p21, 0, %s20
    %s23 = sadd.s32 1, %s14
    %s24 = scalar_select %p21, %s23, %s14
    %p25 = scmp.ge.s32.totalorder %s24, 2
    %s26 = scalar_select %p25, 0, %s24
    %s27 = ssub.s32 %s14, %s26
    %s28 = ssub.s32 %s15, %s22
    %s29 = sor.u32 %s27, %s28
    %p30 = scmp.eq.s32.totalorder %s29, 0
    %s32 = sadd.s32 %s31, 1
    %s33 = scalar_select %p30, %s31, %s32
    %p36 = pneg %p30
    %p37 = scmp.eq.s32.totalorder %s7, 1
    %p38 = por %p36, %p37
    %p39 = scmp.ne.s32.totalorder %s31, %s34
    %p40 = scmp.eq.s32.totalorder %s7, 0
    %p41 = por %p39, %p40
    %p42 = scmp.ne.s32.totalorder %s31, %s34
    %p43 = scmp.eq.s32.totalorder %s12, 1
    %p44 = por %p42, %p43
    %p45 = scmp.ne.s32.totalorder %s34, %s35
    %p46 = scmp.eq.s32.totalorder %s12, 0
    %p47 = por %p45, %p46
    %p48 = scmp.ne.s32.totalorder %s34, %s35
    %p49 = scmp.eq.s32.totalorder %s13, 1
    %p50 = por %p48, %p49
    %p52 = scmp.ne.s32.totalorder %s35, %s51
    %p53 = scmp.eq.s32.totalorder %s13, 0
    %p54 = por %p52, %p53
    %s55 = ssub.s32 %s14, %s26
    %p56 = scmp.eq.s32.totalorder %s55, 0
    %s58 = sadd.s32 %s57, 1
    %s59 = scalar_select %p56, %s57, %s58
    %p62 = pneg %p56
    %p63 = scmp.eq.s32.totalorder %s7, 1
    %p64 = por %p62, %p63
    %p65 = scmp.ne.s32.totalorder %s57, %s60
    %p66 = scmp.eq.s32.totalorder %s7, 0
    %p67 = por %p65, %p66
    %p68 = scmp.ne.s32.totalorder %s57, %s60
    %p69 = scmp.eq.s32.totalorder %s12, 1
    %p70 = por %p68, %p69
    %p71 = scmp.ne.s32.totalorder %s60, %s61
    %p72 = scmp.eq.s32.totalorder %s12, 0
    %p73 = por %p71, %p72
    %p74 = scmp.ne.s32.totalorder %s60, %s61
    %p75 = scmp.eq.s32.totalorder %s13, 1
    %p76 = por %p74, %p75
    %p78 = scmp.ne.s32.totalorder %s61, %s77
    %p79 = scmp.eq.s32.totalorder %s13, 0
    %p80 = por %p78, %p79
    %p81 = scmp.le.s32.totalorder 1, %s7
    %p82 = scmp.lt.s32.totalorder %s7, 3
    %p83 = pnand %p81, %p82
    %p84 = pneg %p83
    // Predicated region
    $region9: #{cbatchnorm2d.2} parent=5 // pred_check
      _
    $region10: #{cbatchnorm2d.2} parent=5 // pred_check_branch
      %86 = sbr.rel (%p83) target = $region12
    $region11: #{cbatchnorm2d.2} parent=5 // pred_region
      %s87 = ssub.s32 %s7, 1
    $region12: #{cbatchnorm2d.2} parent=5 // pred_fallthru
      _
    %p88 = scmp.lt.s32.totalorder %s7, 2
    // Predicated region
    $region13: #{cbatchnorm2d.2} parent=5 // pred_check
      %p89 = pneg %p88
    $region14: #{cbatchnorm2d.2} parent=5 // pred_check_branch
      %91 = sbr.rel (%p89) target = $region16
    $region15: #{cbatchnorm2d.2} parent=5 // pred_region
      // Predicated region
      $region17: #{cbatchnorm2d.2} parent=15 // pred_check
        %p92 = pneg %p41
      $region18: #{cbatchnorm2d.2} parent=15 // pred_check_branch
        %94 = sbr.rel (%p92) target = $region20
      $region19: #{cbatchnorm2d.2} parent=15 // pred_region
        %s95 = smul.u32 4, %s15
        %p96 = scmp.lt.s32.totalorder %s14, 1
        %s97 = scalar_select %p96, %s14, 1
        %p98 = scmp.lt.s32.totalorder %s95, 3
        %s99 = scalar_select %p98, %s95, 3
        %s100 = smul.addr %s97, 4
        %s101 = sadd.s32 %s99, %s100
        %s102 = smul.addr %s101, 4
        %s103 = scalar_lea.vmem %s0, %s102
        %s104 = smul.u32 4, %s15
      $region20: #{cbatchnorm2d.2} parent=15 // pred_fallthru
        _
    $region16: #{cbatchnorm2d.2} parent=5 // pred_fallthru
      _
    %p105 = scmp.le.s32.totalorder 1, %s7
    %p106 = scmp.lt.s32.totalorder %s7, 3
    %p107 = pnand %p105, %p106
    %p108 = pneg %p107
    // Predicated region
    $region21: #{cbatchnorm2d.2} parent=5 // pred_check
      _
    $region22: #{cbatchnorm2d.2} parent=5 // pred_check_branch
      %110 = sbr.rel (%p107) target = $region24
    $region23: #{cbatchnorm2d.2} parent=5 // pred_region
      %s111 = ssub.s32 %s7, 1
      %s112 = smul.u32 4, %s17
      %p113 = scmp.lt.s32.totalorder %s16, 1
      %s114 = scalar_select %p113, %s16, 1
      %p115 = scmp.lt.s32.totalorder %s112, 3
      %s116 = scalar_select %p115, %s112, 3
      %s117 = smul.addr %s114, 4
      %s118 = sadd.s32 %s116, %s117
      %s119 = smul.addr %s118, 4
      %s120 = scalar_lea.vmem %s0, %s119
      %p121 = pneg %p47
      %p122 = pneg %p44
      %p123 = pneg %p73
      %p124 = pneg %p70
      %p125 = scmp.lt.s32.totalorder %s16, 1
      %s126 = scalar_select %p125, %s16, 1
      %s127 = smul.addr %s126, 4
      %s128 = scalar_lea.vmem %s1, %s127
      %s129 = smul.u32 4, %s17
      %p130 = scmp.lt.s32.totalorder %s16, 1
      %s131 = scalar_select %p130, %s16, 1
      %p132 = scmp.lt.s32.totalorder %s129, 3
      %s133 = scalar_select %p132, %s129, 3
      %s134 = smul.addr %s131, 4
      %s135 = sadd.s32 %s133, %s134
      %s136 = smul.addr %s135, 4
      %s137 = scalar_lea.vmem %s0, %s136
      %s138 = smul.u32 4, %s17
      %p139 = scmp.lt.s32.totalorder %s16, 1
      %s140 = scalar_select %p139, %s16, 1
      %s141 = smul.addr %s140, 4
      %s142 = scalar_lea.vmem %s1, %s141
      %p143 = scmp.eq.s32.totalorder %s17, 0
      // Predicated region
      $region25: #{cbatchnorm2d.2} parent=23 // pred_check
        %p144 = pneg %p143
      $region26: #{cbatchnorm2d.2} parent=23 // pred_check_branch
        %146 = sbr.rel (%p144) target = $region28
      $region27: #{cbatchnorm2d.2} parent=23 // pred_region
        %vm147 = vcmask 27648
        %148 = vst.msk [vmem:[%s142] sm:$0xf] %vm147, 0.0
      $region28: #{cbatchnorm2d.2} parent=23 // pred_fallthru
        _
      %v149 = vld [vmem:[%s137] sm:$0xff]
      %v150 = vld [vmem:[%s137 + $0x8] sm:$0xff]
      %v151 = vlaneseq
      %v152 = vand.u32 %v151, 127
      %v153 = vadd.s32 %v152, 128
      %v154 = vadd.s32 %v152, 256
      %v155 = vadd.s32 %v152, 384
      %v156 = vand.u32 %v152, 1
      %v157 = vand.u32 %v153, 1
      %v158 = vand.u32 %v154, 1
      %v159 = vand.u32 %v155, 1
      %vm160 = vcmp.eq.s32.totalorder %v156, 0
      %vm161 = vcmp.eq.s32.totalorder %v157, 0
      %vm162 = vcmp.eq.s32.totalorder %v158, 0
      %vm163 = vcmp.eq.s32.totalorder %v159, 0
      %vm164 = vmxor %vm160, 1
      %vm165 = vmxor %vm161, 1
      %vm166 = vmxor %vm162, 1
      %vm167 = vmxor %vm163, 1
      %v170 = vcombine.high %v149, %v149
      %v171 = vcombine.high %v150, %v150
      %v174 = vsel %vm160, %v149, 0.0
      %v175 = vsel %vm161, %v170, 0.0
      %v176 = vsel %vm162, %v150, 0.0
      %v177 = vsel %vm163, %v171, 0.0
      %v178 = vsel %vm164, %v149, 0.0
      %v179 = vsel %vm165, %v170, 0.0
      %v180 = vsel %vm166, %v150, 0.0
      %v181 = vsel %vm167, %v171, 0.0
      %vm182 = vcmask 1043456
      %v183 = vsel %vm182, %v174, 0.0
      %v184 = vsel %vm182, %v175, 0.0
      %v185 = vadd.f32 %v183, %v184
      %v186 = vsel %vm182, %v176, 0.0
      %v187 = vadd.f32 %v185, %v186
      %v188 = vsel %vm182, %v177, 0.0
      %v189 = vadd.f32 %v187, %v188
      %190 = vadd.xlane.f32.xlu0 %v189
      %v191 = vpop.xlane.xlu0 %190
      %v192 = vsel %vm182, %v178, 0.0
      %v193 = vsel %vm182, %v179, 0.0
      %v194 = vadd.f32 %v192, %v193
      %v195 = vsel %vm182, %v180, 0.0
      %v196 = vadd.f32 %v194, %v195
      %v197 = vsel %vm182, %v181, 0.0
      %v198 = vadd.f32 %v196, %v197
      %199 = vadd.xlane.f32.xlu0 %v198
      %v200 = vpop.xlane.xlu0 %199
      %v201 = vmul.f32 %v174, %v174
      %v202 = vmul.f32 %v175, %v175
      %v203 = vmul.f32 %v176, %v176
      %v204 = vmul.f32 %v177, %v177
      %v205 = vsel %vm182, %v201, 0.0
      %v206 = vsel %vm182, %v202, 0.0
      %v207 = vadd.f32 %v205, %v206
      %v208 = vsel %vm182, %v203, 0.0
      %v209 = vadd.f32 %v207, %v208
      %v210 = vsel %vm182, %v204, 0.0
      %v211 = vadd.f32 %v209, %v210
      %212 = vadd.xlane.f32.xlu0 %v211
      %v213 = vpop.xlane.xlu0 %212
      %v214 = vmul.f32 %v178, %v178
      %v215 = vmul.f32 %v179, %v179
      %v216 = vmul.f32 %v180, %v180
      %v217 = vmul.f32 %v181, %v181
      %v218 = vsel %vm182, %v214, 0.0
      %v219 = vsel %vm182, %v215, 0.0
      %v220 = vadd.f32 %v218, %v219
      %v221 = vsel %vm182, %v216, 0.0
      %v222 = vadd.f32 %v220, %v221
      %v223 = vsel %vm182, %v217, 0.0
      %v224 = vadd.f32 %v222, %v223
      %225 = vadd.xlane.f32.xlu0 %v224
      %v226 = vpop.xlane.xlu0 %225
      %vm227 = vcmask 7168
      %v228 = vsel %vm227, %v191, %v200
      %vm229 = vcmask 15360
      %v230 = vsel %vm229, %v228, %v213
      %vm231 = vcmask 23552
      %v232 = vsel %vm231, %v230, %v226
      %v233 = vld [vmem:[%s142] sm:$0xf]
      %v234 = vadd.f32 %v233, %v232
      %vm235 = vcmask 27648
      %236 = vst.msk [vmem:[%s142] sm:$0xf] %vm235, %v234
      %p237 = scmp.lt.s32.totalorder %s16, 1
      %s238 = scalar_select %p237, %s16, 1
      %s239 = smul.addr %s238, 4
      %s240 = scalar_lea.vmem %s1, %s239
      // Predicated region
      $region29: #{cbatchnorm2d.2} parent=23 // pred_check
        %p241 = pneg %p70
      $region30: #{cbatchnorm2d.2} parent=23 // pred_check_branch
        %243 = sbr.rel (%p241) target = $region32
      $region31: #{cbatchnorm2d.2} parent=23 // pred_region
        _
      $region32: #{cbatchnorm2d.2} parent=23 // pred_fallthru
        _
    $region24: #{cbatchnorm2d.2} parent=5 // pred_fallthru
      _
    %p244 = scmp.le.s32.totalorder 2, %s7
    // Predicated region
    $region33: #{cbatchnorm2d.2} parent=5 // pred_check
      %p245 = pneg %p244
    $region34: #{cbatchnorm2d.2} parent=5 // pred_check_branch
      %247 = sbr.rel (%p245) target = $region36
    $region35: #{cbatchnorm2d.2} parent=5 // pred_region
      %s248 = ssub.s32 %s7, 2
      // Predicated region
      $region37: #{cbatchnorm2d.2} parent=35 // pred_check
        %p249 = pneg %p76
      $region38: #{cbatchnorm2d.2} parent=35 // pred_check_branch
        %251 = sbr.rel (%p249) target = $region40
      $region39: #{cbatchnorm2d.2} parent=35 // pred_region
        %p252 = scmp.lt.s32.totalorder %s18, 1
        %s253 = scalar_select %p252, %s18, 1
        %s254 = smul.addr %s253, 4
        %s255 = scalar_lea.vmem %s1, %s254
      $region40: #{cbatchnorm2d.2} parent=35 // pred_fallthru
        _
    $region36: #{cbatchnorm2d.2} parent=5 // pred_fallthru
      _
  $region6: #{cbatchnorm2d.2} parent=0 // loop_footer
    %s11 = sadd.s32 1, %s7
  $region7: #{cbatchnorm2d.2} parent=0 // loop_footer_branch
    %6 = sbr.rel target = $region3
  $region8: #{cbatchnorm2d.2} parent=0 // loop_exit
    _

// kernel: cbatchnorm2d.3
$region0: #{cbatchnorm2d.3}
  #allocation0 [shape = 'u32[]', space=smem, size = 0x4, offset = 0x4, fixed_abs, tag = 'smem constant byte address 0x4 - core index']
  #allocation1 [shape = 'u32[144,128]{1,0:T(1,128)}', space=vmem, size = 0x12000, scoped, tag = 'internal scratch']
  %s0 = inlined_call_operand.vmem [shape: f32[2,4,512], index: 0, kind: input, shape index: {}]
  %s1 = inlined_call_operand.vmem [shape: f32[4,2], index: 1, kind: input, shape index: {}]
  %s2 = inlined_call_operand.vmem [shape: f32[4,2], index: 2, kind: input, shape index: {}]
  %s3 = inlined_call_operand.vmem [shape: f32[2,4,512], index: 3, kind: output, shape index: {}]
  %s4 = sld [smem:[#allocation0]]
  $region45: #{cbatchnorm2d.3} parent=0
    _
  %s6 = ssub.s32 1, %s4
  %s7 = scalar_select 0, %s6, %s4
  loop: start=0, step=1, limit=4
  $region2: #{cbatchnorm2d.3} parent=0 // loop_pre_header
    _
  $region3: #{cbatchnorm2d.3} parent=0 // loop_header
    %s9 = sphi 0, %s13
    %p10 = scmp.ge.s32.totalorder %s9, 4
    %s16 = sphi 0, %s28
    %s17 = sphi 0, %s24
    %s18 = sphi 0, %s16
    %s19 = sphi 0, %s17
    %s20 = sphi 0, %s18
    %s21 = sphi 0, %s19
    %s33 = sphi 0, %s35
    %s36 = sphi 0, %s33
    %s37 = sphi 0, %s36
    %s53 = sphi 0, %s37
    %s57 = sphi 0, %s57
    %s59 = sphi 0, %s57
    %s60 = sphi 0, %s59
    %s74 = sphi 0, %s60
    %s78 = sphi 0, %s78
    %s80 = sphi 0, %s78
    %s81 = sphi 0, %s80
    %s95 = sphi 0, %s81
    %s103 = sphi 0, %s105
    %s106 = sphi 0, %s103
    %s107 = sphi 0, %s106
    %s123 = sphi 0, %s107
  $region4: #{cbatchnorm2d.3} parent=0 // loop_header_branch
    %12 = sbr.rel (%p10) target = $region8
  $region5: #{cbatchnorm2d.3} parent=0 // loop_body
    %s14 = ssub.s32 %s9, 1
    %s15 = ssub.s32 %s9, 2
    %s22 = sadd.s32 1, %s17
    %p23 = scmp.ge.s32.totalorder %s22, 1
    %s24 = scalar_select %p23, 0, %s22
    %s25 = sadd.s32 1, %s16
    %s26 = scalar_select %p23, %s25, %s16
    %p27 = scmp.ge.s32.totalorder %s26, 2
    %s28 = scalar_select %p27, 0, %s26
    %s29 = ssub.s32 %s16, %s28
    %s30 = ssub.s32 %s17, %s24
    %s31 = sor.u32 %s29, %s30
    %p32 = scmp.eq.s32.totalorder %s31, 0
    %s34 = sadd.s32 %s33, 1
    %s35 = scalar_select %p32, %s33, %s34
    %p38 = pneg %p32
    %p39 = scmp.eq.s32.totalorder %s9, 1
    %p40 = por %p38, %p39
    %p41 = scmp.ne.s32.totalorder %s33, %s36
    %p42 = scmp.eq.s32.totalorder %s9, 0
    %p43 = por %p41, %p42
    %p44 = scmp.ne.s32.totalorder %s33, %s36
    %p45 = scmp.eq.s32.totalorder %s14, 1
    %p46 = por %p44, %p45
    %p47 = scmp.ne.s32.totalorder %s36, %s37
    %p48 = scmp.eq.s32.totalorder %s14, 0
    %p49 = por %p47, %p48
    %p50 = scmp.ne.s32.totalorder %s36, %s37
    %p51 = scmp.eq.s32.totalorder %s15, 1
    %p52 = por %p50, %p51
    %p54 = scmp.ne.s32.totalorder %s37, %s53
    %p55 = scmp.eq.s32.totalorder %s15, 0
    %p56 = por %p54, %p55
    %s58 = sadd.s32 %s57, 1
    %p61 = scmp.eq.s32.totalorder %s9, 1
    %p62 = scmp.ne.s32.totalorder %s57, %s59
    %p63 = scmp.eq.s32.totalorder %s9, 0
    %p64 = por %p62, %p63
    %p65 = scmp.ne.s32.totalorder %s57, %s59
    %p66 = scmp.eq.s32.totalorder %s14, 1
    %p67 = por %p65, %p66
    %p68 = scmp.ne.s32.totalorder %s59, %s60
    %p69 = scmp.eq.s32.totalorder %s14, 0
    %p70 = por %p68, %p69
    %p71 = scmp.ne.s32.totalorder %s59, %s60
    %p72 = scmp.eq.s32.totalorder %s15, 1
    %p73 = por %p71, %p72
    %p75 = scmp.ne.s32.totalorder %s60, %s74
    %p76 = scmp.eq.s32.totalorder %s15, 0
    %p77 = por %p75, %p76
    %s79 = sadd.s32 %s78, 1
    %p82 = scmp.eq.s32.totalorder %s9, 1
    %p83 = scmp.ne.s32.totalorder %s78, %s80
    %p84 = scmp.eq.s32.totalorder %s9, 0
    %p85 = por %p83, %p84
    %p86 = scmp.ne.s32.totalorder %s78, %s80
    %p87 = scmp.eq.s32.totalorder %s14, 1
    %p88 = por %p86, %p87
    %p89 = scmp.ne.s32.totalorder %s80, %s81
    %p90 = scmp.eq.s32.totalorder %s14, 0
    %p91 = por %p89, %p90
    %p92 = scmp.ne.s32.totalorder %s80, %s81
    %p93 = scmp.eq.s32.totalorder %s15, 1
    %p94 = por %p92, %p93
    %p96 = scmp.ne.s32.totalorder %s81, %s95
    %p97 = scmp.eq.s32.totalorder %s15, 0
    %p98 = por %p96, %p97
    %s99 = ssub.s32 %s16, %s28
    %s100 = ssub.s32 %s17, %s24
    %s101 = sor.u32 %s99, %s100
    %p102 = scmp.eq.s32.totalorder %s101, 0
    %s104 = sadd.s32 %s103, 1
    %s105 = scalar_select %p102, %s103, %s104
    %p108 = pneg %p102
    %p109 = scmp.eq.s32.totalorder %s9, 1
    %p110 = por %p108, %p109
    %p111 = scmp.ne.s32.totalorder %s103, %s106
    %p112 = scmp.eq.s32.totalorder %s9, 0
    %p113 = por %p111, %p112
    %p114 = scmp.ne.s32.totalorder %s103, %s106
    %p115 = scmp.eq.s32.totalorder %s14, 1
    %p116 = por %p114, %p115
    %p117 = scmp.ne.s32.totalorder %s106, %s107
    %p118 = scmp.eq.s32.totalorder %s14, 0
    %p119 = por %p117, %p118
    %p120 = scmp.ne.s32.totalorder %s106, %s107
    %p121 = scmp.eq.s32.totalorder %s15, 1
    %p122 = por %p120, %p121
    %p124 = scmp.ne.s32.totalorder %s107, %s123
    %p125 = scmp.eq.s32.totalorder %s15, 0
    %p126 = por %p124, %p125
    %p127 = scmp.le.s32.totalorder 1, %s9
    %p128 = scmp.lt.s32.totalorder %s9, 3
    %p129 = pnand %p127, %p128
    %p130 = pneg %p129
    // Predicated region
    $region9: #{cbatchnorm2d.3} parent=5 // pred_check
      _
    $region10: #{cbatchnorm2d.3} parent=5 // pred_check_branch
      %132 = sbr.rel (%p129) target = $region12
    $region11: #{cbatchnorm2d.3} parent=5 // pred_region
      %s133 = ssub.s32 %s9, 1
      // Predicated region
      $region13: #{cbatchnorm2d.3} parent=11 // pred_check
        %p134 = pneg %p70
      $region14: #{cbatchnorm2d.3} parent=11 // pred_check_branch
        %136 = sbr.rel (%p134) target = $region16
      $region15: #{cbatchnorm2d.3} parent=11 // pred_region
        _
      $region16: #{cbatchnorm2d.3} parent=11 // pred_fallthru
        _
      // Predicated region
      $region17: #{cbatchnorm2d.3} parent=11 // pred_check
        %p137 = pneg %p91
      $region18: #{cbatchnorm2d.3} parent=11 // pred_check_branch
        %139 = sbr.rel (%p137) target = $region20
      $region19: #{cbatchnorm2d.3} parent=11 // pred_region
        _
      $region20: #{cbatchnorm2d.3} parent=11 // pred_fallthru
        _
    $region12: #{cbatchnorm2d.3} parent=5 // pred_fallthru
      _
    %p140 = scmp.lt.s32.totalorder %s9, 2
    // Predicated region
    $region21: #{cbatchnorm2d.3} parent=5 // pred_check
      %p141 = pneg %p140
    $region22: #{cbatchnorm2d.3} parent=5 // pred_check_branch
      %143 = sbr.rel (%p141) target = $region24
    $region23: #{cbatchnorm2d.3} parent=5 // pred_region
      // Predicated region
      $region25: #{cbatchnorm2d.3} parent=23 // pred_check
        %p144 = pneg %p43
      $region26: #{cbatchnorm2d.3} parent=23 // pred_check_branch
        %146 = sbr.rel (%p144) target = $region28
      $region27: #{cbatchnorm2d.3} parent=23 // pred_region
        %s147 = smul.u32 4, %s17
        %p148 = scmp.lt.s32.totalorder %s16, 1
        %s149 = scalar_select %p148, %s16, 1
        %p150 = scmp.lt.s32.totalorder %s147, 3
        %s151 = scalar_select %p150, %s147, 3
        %s152 = smul.addr %s149, 4
        %s153 = sadd.s32 %s151, %s152
        %s154 = smul.addr %s153, 4
        %s155 = scalar_lea.vmem %s0, %s154
        %s156 = smul.u32 4, %s17
      $region28: #{cbatchnorm2d.3} parent=23 // pred_fallthru
        _
    $region24: #{cbatchnorm2d.3} parent=5 // pred_fallthru
      _
    %p157 = scmp.le.s32.totalorder 1, %s9
    %p158 = scmp.lt.s32.totalorder %s9, 3
    %p159 = pnand %p157, %p158
    %p160 = pneg %p159
    // Predicated region
    $region29: #{cbatchnorm2d.3} parent=5 // pred_check
      _
    $region30: #{cbatchnorm2d.3} parent=5 // pred_check_branch
      %162 = sbr.rel (%p159) target = $region32
    $region31: #{cbatchnorm2d.3} parent=5 // pred_region
      %s163 = ssub.s32 %s9, 1
      %s164 = smul.u32 4, %s19
      %p165 = scmp.lt.s32.totalorder %s18, 1
      %s166 = scalar_select %p165, %s18, 1
      %p167 = scmp.lt.s32.totalorder %s164, 3
      %s168 = scalar_select %p167, %s164, 3
      %s169 = smul.addr %s166, 4
      %s170 = sadd.s32 %s168, %s169
      %s171 = smul.addr %s170, 4
      %s172 = scalar_lea.vmem %s0, %s171
      %p173 = pneg %p49
      %p174 = pneg %p46
      %p175 = pneg %p70
      %p176 = pneg %p67
      %p177 = pneg %p91
      %p178 = pneg %p88
      %p179 = pneg %p119
      %p180 = pneg %p116
      %s181 = smul.u32 4, %s19
      %p182 = scmp.lt.s32.totalorder %s18, 1
      %s183 = scalar_select %p182, %s18, 1
      %p184 = scmp.lt.s32.totalorder %s181, 3
      %s185 = scalar_select %p184, %s181, 3
      %s186 = smul.addr %s183, 4
      %s187 = sadd.s32 %s185, %s186
      %s188 = smul.addr %s187, 4
      %s189 = scalar_lea.vmem %s3, %s188
      %s190 = smul.u32 4, %s19
      %p191 = scmp.lt.s32.totalorder %s18, 1
      %s192 = scalar_select %p191, %s18, 1
      %p193 = scmp.lt.s32.totalorder %s190, 3
      %s194 = scalar_select %p193, %s190, 3
      %s195 = smul.addr %s192, 4
      %s196 = sadd.s32 %s194, %s195
      %s197 = smul.addr %s196, 4
      %s198 = scalar_lea.vmem %s0, %s197
      %s199 = smul.u32 4, %s19
      %s200 = smul.u32 4, %s19
      %p201 = scmp.lt.s32.totalorder %s18, 1
      %s202 = scalar_select %p201, %s18, 1
      %p203 = scmp.lt.s32.totalorder %s200, 3
      %s204 = scalar_select %p203, %s200, 3
      %s205 = smul.addr %s202, 4
      %s206 = sadd.s32 %s204, %s205
      %s207 = smul.addr %s206, 4
      %s208 = scalar_lea.vmem %s3, %s207
      %s209 = smul.u32 4, %s19
      %v210 = vld [vmem:[%s198] sm:$0xff]
      %v211 = vld [vmem:[%s198 + $0x8] sm:$0xff]
      %v212 = vlaneseq
      %v213 = vand.u32 %v212, 127
      %v214 = vadd.s32 %v213, 128
      %v215 = vadd.s32 %v213, 256
      %v216 = vadd.s32 %v213, 384
      %v217 = vand.u32 %v213, 1
      %v218 = vand.u32 %v214, 1
      %v219 = vand.u32 %v215, 1
      %v220 = vand.u32 %v216, 1
      %vm221 = vcmp.eq.s32.totalorder %v217, 0
      %vm222 = vcmp.eq.s32.totalorder %v218, 0
      %vm223 = vcmp.eq.s32.totalorder %v219, 0
      %vm224 = vcmp.eq.s32.totalorder %v220, 0
      %v225 = vld [vmem:[%s1] sm:$0xf]
      %227 = vset.pattern.permute.xlu0 0
      %228 = vperm.xlu0 %227, %v225
      %v229 = vpop.permute.xlu0 %228
      %231 = vset.pattern.permute.xlu0 1
      %232 = vperm.xlu0 %231, %v225
      %v233 = vpop.permute.xlu0 %232
      %v235 = vsel %vm221, %v229, %v233
      %v236 = vsel %vm222, %v229, %v233
      %v237 = vsel %vm223, %v229, %v233
      %v238 = vsel %vm224, %v229, %v233
      %v239 = vld [vmem:[%s2] sm:$0xf]
      %241 = vset.pattern.permute.xlu0 0
      %242 = vperm.xlu0 %241, %v239
      %v243 = vpop.permute.xlu0 %242
      %245 = vset.pattern.permute.xlu0 1
      %246 = vperm.xlu0 %245, %v239
      %v247 = vpop.permute.xlu0 %246
      %v249 = vsel %vm221, %v243, %v247
      %v250 = vsel %vm222, %v243, %v247
      %v251 = vsel %vm223, %v243, %v247
      %v252 = vsel %vm224, %v243, %v247
      %v257 = vcombine.low %v235, %v236
      %v258 = vcombine.low %v237, %v238
      %v261 = vmul.f32 %v210, %v257
      %v262 = vmul.f32 %v211, %v258
      %v267 = vcombine.low %v249, %v250
      %v268 = vcombine.low %v251, %v252
      %v271 = vadd.f32 %v261, %v267
      %v272 = vadd.f32 %v262, %v268
      %273 = vst [vmem:[%s208] sm:$0xff] %v271
      %274 = vst [vmem:[%s208 + $0x8] sm:$0xff] %v272
      %s275 = smul.u32 4, %s19
      %p276 = scmp.lt.s32.totalorder %s18, 1
      %s277 = scalar_select %p276, %s18, 1
      %p278 = scmp.lt.s32.totalorder %s275, 3
      %s279 = scalar_select %p278, %s275, 3
      %s280 = smul.addr %s277, 4
      %s281 = sadd.s32 %s279, %s280
      %s282 = smul.addr %s281, 4
      %s283 = scalar_lea.vmem %s3, %s282
      // Predicated region
      $region33: #{cbatchnorm2d.3} parent=31 // pred_check
        %p284 = pneg %p116
      $region34: #{cbatchnorm2d.3} parent=31 // pred_check_branch
        %286 = sbr.rel (%p284) target = $region36
      $region35: #{cbatchnorm2d.3} parent=31 // pred_region
        %s287 = smul.u32 4, %s19
      $region36: #{cbatchnorm2d.3} parent=31 // pred_fallthru
        _
    $region32: #{cbatchnorm2d.3} parent=5 // pred_fallthru
      _
    %p288 = scmp.le.s32.totalorder 2, %s9
    // Predicated region
    $region37: #{cbatchnorm2d.3} parent=5 // pred_check
      %p289 = pneg %p288
    $region38: #{cbatchnorm2d.3} parent=5 // pred_check_branch
      %291 = sbr.rel (%p289) target = $region40
    $region39: #{cbatchnorm2d.3} parent=5 // pred_region
      %s292 = ssub.s32 %s9, 2
      // Predicated region
      $region41: #{cbatchnorm2d.3} parent=39 // pred_check
        %p293 = pneg %p122
      $region42: #{cbatchnorm2d.3} parent=39 // pred_check_branch
        %295 = sbr.rel (%p293) target = $region44
      $region43: #{cbatchnorm2d.3} parent=39 // pred_region
        %s296 = smul.u32 4, %s21
        %p297 = scmp.lt.s32.totalorder %s20, 1
        %s298 = scalar_select %p297, %s20, 1
        %p299 = scmp.lt.s32.totalorder %s296, 3
        %s300 = scalar_select %p299, %s296, 3
        %s301 = smul.addr %s298, 4
        %s302 = sadd.s32 %s300, %s301
        %s303 = smul.addr %s302, 4
        %s304 = scalar_lea.vmem %s3, %s303
      $region44: #{cbatchnorm2d.3} parent=39 // pred_fallthru
        _
    $region40: #{cbatchnorm2d.3} parent=5 // pred_fallthru
      _
  $region6: #{cbatchnorm2d.3} parent=0 // loop_footer
    %s13 = sadd.s32 1, %s9
  $region7: #{cbatchnorm2d.3} parent=0 // loop_footer_branch
    %8 = sbr.rel target = $region3
  $region8: #{cbatchnorm2d.3} parent=0 // loop_exit
    _

</llo_original>
